<compile_context>
chip_gen: v7x
topology: tpu7x:2x2x1
jax: 0.10.0
libtpu: 0.0.40
codegen_flags: <defaults>
</compile_context>

<pallas_src>
import functools

import numpy as np
import jax
import jax.numpy as jnp
from jax import lax
from jax.experimental import pallas as pl
from jax.experimental.pallas import tpu as pltpu


def summary_boosting_kernel(xT_ref, w_ref, a_ref, out_ref, oh_ref, *,
                            c_real, c_pad, t_rounds):
    """One row-tile of the boosted vote.

    xT_ref:  (D, TILE_N)        bf16  transposed feature rows (lane-dense)
    w_ref:   (T*C_pad, D)       bf16  fused weights, row t*C_pad+j = W[t, :, j]
    a_ref:   (C_pad, T*C_pad)   f32   a[cls, t*C_pad+j] = alpha[t] * P[t, j, cls]
    out_ref: (1, TILE_N)        i32   winning class index per sample
    oh_ref:  (T*C_pad, TILE_N)  f32   VMEM scratch: per-round one-hot predictions
    """
    xT = xT_ref[...]                    # (D, n) bf16
    w = w_ref[...]                      # (T*C_pad, D) bf16
    n = xT.shape[1]

    # All T weak-learner matmuls in one lane-dense MXU pass, samples on lanes:
    #   logits[t*C_pad + j, i] = W[t, :, j] . x[i]
    logits = jnp.dot(w, xT, preferred_element_type=jnp.float32)   # (T*C_pad, n)

    cls_ids = lax.broadcasted_iota(jnp.int32, (c_pad, n), 0)
    # Padded (fake) learner classes have all-zero weight rows -> logit 0; mask
    # them so they can never beat a genuinely negative real logit.
    neg = jnp.where(cls_ids >= c_real, -jnp.inf, 0.0).astype(jnp.float32)

    # Per-round first-argmax over that round's C_pad sublane-aligned rows,
    # written as a (C_pad, n) one-hot slice into scratch.  Argmax happens
    # BEFORE any remap (reference semantics); total cost O(T*C_pad*n).
    for t in range(t_rounds):
        lt = logits[t * c_pad:(t + 1) * c_pad, :] + neg            # (C_pad, n)
        mx = jnp.max(lt, axis=0, keepdims=True)                    # (1, n)
        pred = jnp.min(jnp.where(lt == mx, cls_ids, c_pad),
                       axis=0, keepdims=True)                      # (1, n)
        oh_ref[t * c_pad:(t + 1) * c_pad, :] = (
            cls_ids == pred).astype(jnp.float32)

    # Weighted vote (alpha folded into the remap matrix) + final first-argmax.
    scores = jnp.dot(a_ref[...], oh_ref[...],
                     preferred_element_type=jnp.float32)           # (C_pad, n)
    scores = scores + neg              # padded output classes can never win
    mx = jnp.max(scores, axis=0, keepdims=True)
    winner = jnp.min(jnp.where(scores == mx, cls_ids, c_pad),
                     axis=0, keepdims=True)                        # (1, n)
    out_ref[...] = winner


def _round_up(a, b):
    return (a + b - 1) // b * b


@functools.partial(jax.jit, static_argnames=("tile_n",))
def summary_boosting_indices(x, W, P, alpha, *, tile_n=2048):
    """Device path: returns (N,) int32 indices into `classes` for each row."""
    N, D = x.shape
    T, _, C = W.shape
    C_pad = _round_up(C, 8)            # sublane-align each round's class block
    TCp = T * C_pad

    # Fuse + pad the T weak-learner matmuls: row t*C_pad+j of w_fused = W[t,:,j].
    W_pad = jnp.zeros((T, D, C_pad), jnp.float32).at[:, :, :C].set(
        W.astype(jnp.float32))
    w_fused = jnp.transpose(W_pad, (0, 2, 1)).reshape(TCp, D).astype(jnp.bfloat16)

    # Fold alpha into the (padded) label-remap vote matrix; padded rows/cols are 0.
    P_pad = jnp.zeros((T, C_pad, C_pad), jnp.float32).at[:, :C, :C].set(
        P.astype(jnp.float32))
    a_vote = (alpha.astype(jnp.float32).reshape(T, 1, 1) * P_pad)
    a_vote = a_vote.transpose(2, 0, 1).reshape(C_pad, TCp)

    # Lane-aligned row tiling:
    #  * always a multiple of 128 (lane-dense DMA / output stores),
    #  * capped so the (T*C_pad, tile_n) f32 temporaries stay well inside the
    #    64 MiB v7x VMEM,
    #  * capped so the grid has >= 2 steps (keeps both v7x TensorCores busy).
    bytes_per_col = 8 * TCp + 32 * C_pad + 4 * D + 16
    max_cols = max(128, ((24 << 20) // bytes_per_col) // 128 * 128)
    tile_n = max(128, min(int(tile_n), _round_up(N, 128)))
    tile_n = _round_up(tile_n, 128)
    if N > 128:
        tile_n = min(tile_n, _round_up((N + 1) // 2, 128))
    tile_n = min(tile_n, max_cols)

    n_pad = _round_up(N, tile_n)
    # Transposed, bf16 activations: (D, n_pad) tiles are lane-dense and halve
    # the dominant HBM stream.  Padded columns are zero and sliced off below.
    xT = jnp.pad(x.astype(jnp.bfloat16).T, ((0, 0), (0, n_pad - N)))
    grid = (n_pad // tile_n,)

    # VMEM budget from the actual footprint: double-buffered xT/out tiles,
    # resident (double-buffered by default) W/A blocks, one-hot scratch,
    # logits temporary, plus small per-column temporaries and headroom.
    # NOTE: for very large T*C the grid-invariant W/A blocks could be
    # single-buffered (pipeline_mode=pl.Buffered(1)); negligible at these sizes.
    vmem_bytes = (2 * (D * tile_n * 2 + tile_n * 4)
                  + 2 * (TCp * D * 2 + C_pad * TCp * 4)
                  + 2 * TCp * tile_n * 4
                  + 8 * C_pad * tile_n * 4) + (2 << 20)
    vmem_bytes = int(min(max(vmem_bytes, 4 << 20), 40 << 20))

    kernel = functools.partial(summary_boosting_kernel,
                               c_real=C, c_pad=C_pad, t_rounds=T)
    out = pl.pallas_call(
        kernel,
        out_shape=jax.ShapeDtypeStruct((1, n_pad), jnp.int32),
        grid=grid,
        in_specs=[
            pl.BlockSpec((D, tile_n), lambda i: (0, i)),     # xT tiles, lane-dense
            pl.BlockSpec((TCp, D), lambda i: (0, 0)),        # fused W (grid-invariant)
            pl.BlockSpec((C_pad, TCp), lambda i: (0, 0)),    # alpha*P (grid-invariant)
        ],
        out_specs=pl.BlockSpec((1, tile_n), lambda i: (0, i)),
        scratch_shapes=[pltpu.VMEM((TCp, tile_n), jnp.float32)],
        compiler_params=pltpu.CompilerParams(
            dimension_semantics=("parallel",),
            vmem_limit_bytes=vmem_bytes),
    )(xT, w_fused, a_vote)
    return out[0, :N]


def summary_boosting_forward(x, W, P, alpha, classes, tile_n=2048):
    idx = summary_boosting_indices(x, W, P, alpha, tile_n=tile_n)
    idx = jax.block_until_ready(idx)
    # Single vectorized class lookup (labels are arbitrary Python objects).
    preds = np.asarray(classes, dtype=object)[np.asarray(idx)].tolist()
    return preds, [None] * len(preds)
    # TODO(synk): the original module's self.summaries[t] are arbitrary
    # black-box callables; they are modeled here as fixed linear classifiers.


# ------------------------- pure-numpy reference --------------------------
def reference_forward(x, W, P_perms, alpha, classes):
    """Mimics SummaryBoosting.forward + compute_combined_error semantics."""
    x = np.asarray(x)
    T = W.shape[0]
    round_preds = {}
    for t in range(T):
        logits = x @ np.asarray(W[t])
        learner_pred_idx = np.argmax(logits, axis=-1)
        round_preds[t] = [classes[P_perms[t][j]] for j in learner_pred_idx]
    combined = []
    for i in range(x.shape[0]):
        cls_score = {}
        for cls in classes:
            s = 0.0
            for t in range(T):
                s += float(alpha[t]) * (round_preds[t][i] == cls)
            cls_score[cls] = s
        combined.append(classes[int(np.argmax([cls_score[c] for c in classes]))])
    return combined, [None] * len(combined)


if __name__ == "__main__":
    # Small deterministic setup.  N=300 with tile_n=128 exercises the grid
    # (3 row tiles) and the padding/slice path.  Integer-valued features and
    # weights (exactly representable in bf16) plus exactly-representable
    # alphas make the MXU and NumPy paths bit-identical, so argmax
    # tie-breaking is compared exactly.
    N, D, C, T = 300, 32, 4, 4
    classes = [0, 1, 2, 3]

    key = jax.random.PRNGKey(0)
    kx, kw = jax.random.split(key)
    x = jnp.round(jax.random.normal(kx, (N, D)) * 3.0).astype(jnp.float32)
    W = jnp.round(jax.random.normal(kw, (T, D, C)) * 3.0).astype(jnp.float32)

    # Deterministic label mappings: round t maps learner class j -> (j + t) % C.
    P_perms = np.stack([np.roll(np.arange(C), -t) for t in range(T)])  # (T, C)
    P_np = np.zeros((T, C, C), dtype=np.float32)
    for t in range(T):
        for j in range(C):
            P_np[t, j, P_perms[t, j]] = 1.0
    P = jnp.asarray(P_np)

    alpha_np = np.array([0.75, 0.5, 0.25, 0.625], dtype=np.float32)
    alpha = jnp.asarray(alpha_np)

    preds, extras = summary_boosting_forward(x, W, P, alpha, classes, tile_n=128)
    ref_preds, _ = reference_forward(np.asarray(x), np.asarray(W), P_perms,
                                     alpha_np, classes)

    n_match = sum(int(a == b) for a, b in zip(preds, ref_preds))
    assert preds == ref_preds, f"mismatch: only {n_match}/{N} rows agree"
    assert extras == [None] * N
    print("KERNEL_OK")
</pallas_src>

<mosaic_0001>
module attributes {stable_mosaic.version = 11 : i64} {
  func.func @summary_boosting_kernel(%arg0: i32, %arg1: memref<32x128xbf16, #tpu.memory_space<vmem>>, %arg2: memref<32x32xbf16, #tpu.memory_space<vmem>>, %arg3: memref<8x32xf32, #tpu.memory_space<vmem>>, %arg4: memref<1x128xi32, #tpu.memory_space<vmem>>, %arg5: memref<32x128xf32, #tpu.memory_space<vmem>>) attributes {dimension_semantics = [#tpu.dimension_semantics<parallel>], iteration_bounds = array<i64: 3>, scalar_prefetch = 0 : i64, scratch_operands = 1 : i64, tpu.core_type = #tpu.core_type<tc>, window_params = [{transform_indices = @transform_0, window_bounds = array<i64: 32, 128>}, {pipeline_mode = #tpu.pipeline_mode<synchronous>, transform_indices = @transform_1, window_bounds = array<i64: 32, 32>}, {pipeline_mode = #tpu.pipeline_mode<synchronous>, transform_indices = @transform_2, window_bounds = array<i64: 8, 32>}, {transform_indices = @transform_3, window_bounds = array<i64: 1, 128>}]} {
    %c0 = arith.constant 0 : index
    %c0_0 = arith.constant 0 : index
    %0 = vector.load %arg1[%c0, %c0_0] : memref<32x128xbf16, #tpu.memory_space<vmem>>, vector<32x128xbf16>
    %c0_1 = arith.constant 0 : index
    %c0_2 = arith.constant 0 : index
    %1 = vector.load %arg2[%c0_1, %c0_2] : memref<32x32xbf16, #tpu.memory_space<vmem>>, vector<32x32xbf16>
    %cst = arith.constant dense<0.000000e+00> : vector<32x128xf32>
    %2 = tpu.matmul %1, %0, %cst {dimension_numbers = #tpu.dot_dimension_numbers<[1], [0], [0], [1], [0, 0, 1, 1], [], []>} : vector<32x32xbf16>, vector<32x128xbf16>, vector<32x128xf32> -> vector<32x128xf32>
    %3 = tpu.iota {dimensions = array<i32: 0>} : vector<8x128xi32>
    %c4_i32 = arith.constant 4 : i32
    %4 = vector.broadcast %c4_i32 : i32 to vector<8x128xi32>
    %5 = arith.cmpi sge, %3, %4 : vector<8x128xi32>
    %cst_3 = arith.constant 0xFF800000 : f32
    %cst_4 = arith.constant 0.000000e+00 : f32
    %6 = vector.broadcast %cst_3 : f32 to vector<8x128xf32>
    %7 = vector.broadcast %cst_4 : f32 to vector<8x128xf32>
    %8 = arith.select %5, %6, %7 : vector<8x128xi1>, vector<8x128xf32>
    %9 = vector.extract_strided_slice %2 {offsets = [0, 0], sizes = [8, 128], strides = [1, 1]} : vector<32x128xf32> to vector<8x128xf32>
    %10 = arith.addf %9, %8 : vector<8x128xf32>
    %cst_5 = arith.constant dense<0xFF800000> : vector<128xf32>
    %11 = vector.multi_reduction <maximumf>, %10, %cst_5 [0] : vector<8x128xf32> to vector<128xf32>
    %12 = vector.shape_cast %11 : vector<128xf32> to vector<1x128xf32>
    %13 = vector.broadcast %12 : vector<1x128xf32> to vector<8x128xf32>
    %14 = arith.cmpf oeq, %10, %13 : vector<8x128xf32>
    %c8_i32 = arith.constant 8 : i32
    %15 = vector.broadcast %c8_i32 : i32 to vector<8x128xi32>
    %16 = arith.select %14, %3, %15 : vector<8x128xi1>, vector<8x128xi32>
    %cst_6 = arith.constant dense<2147483647> : vector<128xi32>
    %17 = vector.multi_reduction <minsi>, %16, %cst_6 [0] : vector<8x128xi32> to vector<128xi32>
    %18 = vector.shape_cast %17 : vector<128xi32> to vector<1x128xi32>
    %19 = vector.broadcast %18 : vector<1x128xi32> to vector<8x128xi32>
    %20 = arith.cmpi eq, %3, %19 : vector<8x128xi32>
    %21 = arith.extui %20 : vector<8x128xi1> to vector<8x128xi32>
    %22 = arith.sitofp %21 : vector<8x128xi32> to vector<8x128xf32>
    %c0_7 = arith.constant 0 : index
    %c0_8 = arith.constant 0 : index
    %23 = vector.load %arg5[%c0_7, %c0_8] : memref<32x128xf32, #tpu.memory_space<vmem>>, vector<8x128xf32>
    tpu.vector_store %arg5[%c0_7, %c0_8], %22 {strides = array<i32>} : memref<32x128xf32, #tpu.memory_space<vmem>>, vector<8x128xf32>,
    %24 = vector.extract_strided_slice %2 {offsets = [8, 0], sizes = [8, 128], strides = [1, 1]} : vector<32x128xf32> to vector<8x128xf32>
    %25 = arith.addf %24, %8 : vector<8x128xf32>
    %cst_9 = arith.constant dense<0xFF800000> : vector<128xf32>
    %26 = vector.multi_reduction <maximumf>, %25, %cst_9 [0] : vector<8x128xf32> to vector<128xf32>
    %27 = vector.shape_cast %26 : vector<128xf32> to vector<1x128xf32>
    %28 = vector.broadcast %27 : vector<1x128xf32> to vector<8x128xf32>
    %29 = arith.cmpf oeq, %25, %28 : vector<8x128xf32>
    %c8_i32_10 = arith.constant 8 : i32
    %30 = vector.broadcast %c8_i32_10 : i32 to vector<8x128xi32>
    %31 = arith.select %29, %3, %30 : vector<8x128xi1>, vector<8x128xi32>
    %cst_11 = arith.constant dense<2147483647> : vector<128xi32>
    %32 = vector.multi_reduction <minsi>, %31, %cst_11 [0] : vector<8x128xi32> to vector<128xi32>
    %33 = vector.shape_cast %32 : vector<128xi32> to vector<1x128xi32>
    %34 = vector.broadcast %33 : vector<1x128xi32> to vector<8x128xi32>
    %35 = arith.cmpi eq, %3, %34 : vector<8x128xi32>
    %36 = arith.extui %35 : vector<8x128xi1> to vector<8x128xi32>
    %37 = arith.sitofp %36 : vector<8x128xi32> to vector<8x128xf32>
    %c8 = arith.constant 8 : index
    %c0_12 = arith.constant 0 : index
    %38 = vector.load %arg5[%c8, %c0_12] : memref<32x128xf32, #tpu.memory_space<vmem>>, vector<8x128xf32>
    tpu.vector_store %arg5[%c8, %c0_12], %37 {strides = array<i32>} : memref<32x128xf32, #tpu.memory_space<vmem>>, vector<8x128xf32>,
    %39 = vector.extract_strided_slice %2 {offsets = [16, 0], sizes = [8, 128], strides = [1, 1]} : vector<32x128xf32> to vector<8x128xf32>
    %40 = arith.addf %39, %8 : vector<8x128xf32>
    %cst_13 = arith.constant dense<0xFF800000> : vector<128xf32>
    %41 = vector.multi_reduction <maximumf>, %40, %cst_13 [0] : vector<8x128xf32> to vector<128xf32>
    %42 = vector.shape_cast %41 : vector<128xf32> to vector<1x128xf32>
    %43 = vector.broadcast %42 : vector<1x128xf32> to vector<8x128xf32>
    %44 = arith.cmpf oeq, %40, %43 : vector<8x128xf32>
    %c8_i32_14 = arith.constant 8 : i32
    %45 = vector.broadcast %c8_i32_14 : i32 to vector<8x128xi32>
    %46 = arith.select %44, %3, %45 : vector<8x128xi1>, vector<8x128xi32>
    %cst_15 = arith.constant dense<2147483647> : vector<128xi32>
    %47 = vector.multi_reduction <minsi>, %46, %cst_15 [0] : vector<8x128xi32> to vector<128xi32>
    %48 = vector.shape_cast %47 : vector<128xi32> to vector<1x128xi32>
    %49 = vector.broadcast %48 : vector<1x128xi32> to vector<8x128xi32>
    %50 = arith.cmpi eq, %3, %49 : vector<8x128xi32>
    %51 = arith.extui %50 : vector<8x128xi1> to vector<8x128xi32>
    %52 = arith.sitofp %51 : vector<8x128xi32> to vector<8x128xf32>
    %c16 = arith.constant 16 : index
    %c0_16 = arith.constant 0 : index
    %53 = vector.load %arg5[%c16, %c0_16] : memref<32x128xf32, #tpu.memory_space<vmem>>, vector<8x128xf32>
    tpu.vector_store %arg5[%c16, %c0_16], %52 {strides = array<i32>} : memref<32x128xf32, #tpu.memory_space<vmem>>, vector<8x128xf32>,
    %54 = vector.extract_strided_slice %2 {offsets = [24, 0], sizes = [8, 128], strides = [1, 1]} : vector<32x128xf32> to vector<8x128xf32>
    %55 = arith.addf %54, %8 : vector<8x128xf32>
    %cst_17 = arith.constant dense<0xFF800000> : vector<128xf32>
    %56 = vector.multi_reduction <maximumf>, %55, %cst_17 [0] : vector<8x128xf32> to vector<128xf32>
    %57 = vector.shape_cast %56 : vector<128xf32> to vector<1x128xf32>
    %58 = vector.broadcast %57 : vector<1x128xf32> to vector<8x128xf32>
    %59 = arith.cmpf oeq, %55, %58 : vector<8x128xf32>
    %c8_i32_18 = arith.constant 8 : i32
    %60 = vector.broadcast %c8_i32_18 : i32 to vector<8x128xi32>
    %61 = arith.select %59, %3, %60 : vector<8x128xi1>, vector<8x128xi32>
    %cst_19 = arith.constant dense<2147483647> : vector<128xi32>
    %62 = vector.multi_reduction <minsi>, %61, %cst_19 [0] : vector<8x128xi32> to vector<128xi32>
    %63 = vector.shape_cast %62 : vector<128xi32> to vector<1x128xi32>
    %64 = vector.broadcast %63 : vector<1x128xi32> to vector<8x128xi32>
    %65 = arith.cmpi eq, %3, %64 : vector<8x128xi32>
    %66 = arith.extui %65 : vector<8x128xi1> to vector<8x128xi32>
    %67 = arith.sitofp %66 : vector<8x128xi32> to vector<8x128xf32>
    %c24 = arith.constant 24 : index
    %c0_20 = arith.constant 0 : index
    %68 = vector.load %arg5[%c24, %c0_20] : memref<32x128xf32, #tpu.memory_space<vmem>>, vector<8x128xf32>
    tpu.vector_store %arg5[%c24, %c0_20], %67 {strides = array<i32>} : memref<32x128xf32, #tpu.memory_space<vmem>>, vector<8x128xf32>,
    %c0_21 = arith.constant 0 : index
    %c0_22 = arith.constant 0 : index
    %69 = vector.load %arg3[%c0_21, %c0_22] : memref<8x32xf32, #tpu.memory_space<vmem>>, vector<8x32xf32>
    %c0_23 = arith.constant 0 : index
    %c0_24 = arith.constant 0 : index
    %70 = vector.load %arg5[%c0_23, %c0_24] : memref<32x128xf32, #tpu.memory_space<vmem>>, vector<32x128xf32>
    %cst_25 = arith.constant dense<0.000000e+00> : vector<8x128xf32>
    %71 = tpu.matmul %69, %70, %cst_25 {dimension_numbers = #tpu.dot_dimension_numbers<[1], [0], [0], [1], [0, 0, 1, 1], [], []>} : vector<8x32xf32>, vector<32x128xf32>, vector<8x128xf32> -> vector<8x128xf32>
    %72 = arith.addf %71, %8 : vector<8x128xf32>
    %cst_26 = arith.constant dense<0xFF800000> : vector<128xf32>
    %73 = vector.multi_reduction <maximumf>, %72, %cst_26 [0] : vector<8x128xf32> to vector<128xf32>
    %74 = vector.shape_cast %73 : vector<128xf32> to vector<1x128xf32>
    %75 = vector.broadcast %74 : vector<1x128xf32> to vector<8x128xf32>
    %76 = arith.cmpf oeq, %72, %75 : vector<8x128xf32>
    %c8_i32_27 = arith.constant 8 : i32
    %77 = vector.broadcast %c8_i32_27 : i32 to vector<8x128xi32>
    %78 = arith.select %76, %3, %77 : vector<8x128xi1>, vector<8x128xi32>
    %cst_28 = arith.constant dense<2147483647> : vector<128xi32>
    %79 = vector.multi_reduction <minsi>, %78, %cst_28 [0] : vector<8x128xi32> to vector<128xi32>
    %80 = vector.shape_cast %79 : vector<128xi32> to vector<1x128xi32>
    %c0_29 = arith.constant 0 : index
    %c0_30 = arith.constant 0 : index
    %81 = vector.load %arg4[%c0_29, %c0_30] : memref<1x128xi32, #tpu.memory_space<vmem>>, vector<1x128xi32>
    tpu.vector_store %arg4[%c0_29, %c0_30], %80 {strides = array<i32>} : memref<1x128xi32, #tpu.memory_space<vmem>>, vector<1x128xi32>,
    return
  }
  func.func @transform_0(%arg0: i32) -> (i32, i32) {
    %c0_i32 = arith.constant 0 : i32
    %c0_i32_0 = arith.constant 0 : i32
    return %c0_i32, %arg0 : i32, i32
  }
  func.func @transform_1(%arg0: i32) -> (i32, i32) {
    %c0_i32 = arith.constant 0 : i32
    %c0_i32_0 = arith.constant 0 : i32
    %c0_i32_1 = arith.constant 0 : i32
    return %c0_i32, %c0_i32_0 : i32, i32
  }
  func.func @transform_2(%arg0: i32) -> (i32, i32) {
    %c0_i32 = arith.constant 0 : i32
    %c0_i32_0 = arith.constant 0 : i32
    %c0_i32_1 = arith.constant 0 : i32
    return %c0_i32, %c0_i32_0 : i32, i32
  }
  func.func @transform_3(%arg0: i32) -> (i32, i32) {
    %c0_i32 = arith.constant 0 : i32
    %c0_i32_0 = arith.constant 0 : i32
    return %c0_i32, %arg0 : i32, i32
  }
}

</mosaic_0001>

<llo_original>
// kernel: summary_boosting_indices.1
$region0: #{summary_boosting_indices.1}
  #allocation0 [shape = 'u32[]', space=smem, size = 0x4, offset = 0x4, fixed_abs, tag = 'smem constant byte address 0x4 - core index']
  #allocation1 [shape = 'u32[144,128]{1,0:T(1,128)}', space=vmem, size = 0x12000, scoped, tag = 'internal scratch']
  #allocation2 [shape = 'f32[32,128]{1,0:T(8,128)}', space=vmem, size = 0x4000, scoped, tag = 'scratch operand']
  %s0 = inlined_call_operand.vmem [shape: bf16[32,384], index: 0, kind: input, shape index: {}]
  %s1 = inlined_call_operand.vmem [shape: bf16[32,32], index: 1, kind: input, shape index: {}]
  %s2 = inlined_call_operand.vmem [shape: f32[8,32], index: 2, kind: input, shape index: {}]
  %s3 = inlined_call_operand.vmem [shape: s32[1,384], index: 3, kind: output, shape index: {}]
  %s4 = sld [smem:[#allocation0]]
  $region86: #{summary_boosting_indices.1} parent=0
    _
  %s6 = ssub.s32 1, %s4
  %s7 = scalar_select 0, %s6, %s4
  $region1: #{summary_boosting_indices.1} parent=0
    #allocation3 [shape = 'u8[16384]{0}', space=vmem, size = 0x4000, scoped, tag = 'input window, operand 0']
    loop: start=0, step=1, limit=5
    $region2: #{summary_boosting_indices.1} parent=1 // loop_pre_header
      _
    $region3: #{summary_boosting_indices.1} parent=1 // loop_header
      %s9 = sphi 0, %s13
      %p10 = scmp.ge.s32.totalorder %s9, 5
      %s19 = sphi 0, %s21
      %s22 = sphi 0, %s19
      %s23 = sphi 0, %s22
      %s39 = sphi 0, %s23
      %s43 = sphi 0, %s43
      %s45 = sphi 0, %s43
      %s46 = sphi 0, %s45
      %s60 = sphi 0, %s46
      %s64 = sphi 0, %s64
      %s66 = sphi 0, %s64
      %s67 = sphi 0, %s66
      %s81 = sphi 0, %s67
      %s87 = sphi 0, %s89
      %s90 = sphi 0, %s87
      %s91 = sphi 0, %s90
      %s107 = sphi 0, %s91
    $region4: #{summary_boosting_indices.1} parent=1 // loop_header_branch
      %12 = sbr.rel (%p10) target = $region8
    $region5: #{summary_boosting_indices.1} parent=1 // loop_body
      %s14 = ssub.s32 %s9, 1
      %s15 = ssub.s32 %s9, 2
      %s16 = sadd.s32 %s9, 1
      %s17 = ssub.s32 %s9, %s16
      %p18 = scmp.eq.s32.totalorder %s17, 0
      %s20 = sadd.s32 %s19, 1
      %s21 = scalar_select %p18, %s19, %s20
      %p24 = pneg %p18
      %p25 = scmp.eq.s32.totalorder %s9, 2
      %p26 = por %p24, %p25
      %p27 = scmp.ne.s32.totalorder %s19, %s22
      %p28 = scmp.eq.s32.totalorder %s9, 0
      %p29 = por %p27, %p28
      %p30 = scmp.ne.s32.totalorder %s19, %s22
      %p31 = scmp.eq.s32.totalorder %s14, 2
      %p32 = por %p30, %p31
      %p33 = scmp.ne.s32.totalorder %s22, %s23
      %p34 = scmp.eq.s32.totalorder %s14, 0
      %p35 = por %p33, %p34
      %p36 = scmp.ne.s32.totalorder %s22, %s23
      %p37 = scmp.eq.s32.totalorder %s15, 2
      %p38 = por %p36, %p37
      %p40 = scmp.ne.s32.totalorder %s23, %s39
      %p41 = scmp.eq.s32.totalorder %s15, 0
      %p42 = por %p40, %p41
      %s44 = sadd.s32 %s43, 1
      %p47 = scmp.eq.s32.totalorder %s9, 2
      %p48 = scmp.ne.s32.totalorder %s43, %s45
      %p49 = scmp.eq.s32.totalorder %s9, 0
      %p50 = por %p48, %p49
      %p51 = scmp.ne.s32.totalorder %s43, %s45
      %p52 = scmp.eq.s32.totalorder %s14, 2
      %p53 = por %p51, %p52
      %p54 = scmp.ne.s32.totalorder %s45, %s46
      %p55 = scmp.eq.s32.totalorder %s14, 0
      %p56 = por %p54, %p55
      %p57 = scmp.ne.s32.totalorder %s45, %s46
      %p58 = scmp.eq.s32.totalorder %s15, 2
      %p59 = por %p57, %p58
      %p61 = scmp.ne.s32.totalorder %s46, %s60
      %p62 = scmp.eq.s32.totalorder %s15, 0
      %p63 = por %p61, %p62
      %s65 = sadd.s32 %s64, 1
      %p68 = scmp.eq.s32.totalorder %s9, 2
      %p69 = scmp.ne.s32.totalorder %s64, %s66
      %p70 = scmp.eq.s32.totalorder %s9, 0
      %p71 = por %p69, %p70
      %p72 = scmp.ne.s32.totalorder %s64, %s66
      %p73 = scmp.eq.s32.totalorder %s14, 2
      %p74 = por %p72, %p73
      %p75 = scmp.ne.s32.totalorder %s66, %s67
      %p76 = scmp.eq.s32.totalorder %s14, 0
      %p77 = por %p75, %p76
      %p78 = scmp.ne.s32.totalorder %s66, %s67
      %p79 = scmp.eq.s32.totalorder %s15, 2
      %p80 = por %p78, %p79
      %p82 = scmp.ne.s32.totalorder %s67, %s81
      %p83 = scmp.eq.s32.totalorder %s15, 0
      %p84 = por %p82, %p83
      %s85 = ssub.s32 %s9, %s16
      %p86 = scmp.eq.s32.totalorder %s85, 0
      %s88 = sadd.s32 %s87, 1
      %s89 = scalar_select %p86, %s87, %s88
      %p92 = pneg %p86
      %p93 = scmp.eq.s32.totalorder %s9, 2
      %p94 = por %p92, %p93
      %p95 = scmp.ne.s32.totalorder %s87, %s90
      %p96 = scmp.eq.s32.totalorder %s9, 0
      %p97 = por %p95, %p96
      %p98 = scmp.ne.s32.totalorder %s87, %s90
      %p99 = scmp.eq.s32.totalorder %s14, 2
      %p100 = por %p98, %p99
      %p101 = scmp.ne.s32.totalorder %s90, %s91
      %p102 = scmp.eq.s32.totalorder %s14, 0
      %p103 = por %p101, %p102
      %p104 = scmp.ne.s32.totalorder %s90, %s91
      %p105 = scmp.eq.s32.totalorder %s15, 2
      %p106 = por %p104, %p105
      %p108 = scmp.ne.s32.totalorder %s91, %s107
      %p109 = scmp.eq.s32.totalorder %s15, 0
      %p110 = por %p108, %p109
      %p111 = scmp.le.s32.totalorder 1, %s9
      %p112 = scmp.lt.s32.totalorder %s9, 4
      %p113 = pnand %p111, %p112
      %p114 = pneg %p113
      // Predicated region
      $region9: #{summary_boosting_indices.1} parent=5 // pred_check
        _
      $region10: #{summary_boosting_indices.1} parent=5 // pred_check_branch
        %116 = sbr.rel (%p113) target = $region12
      $region11: #{summary_boosting_indices.1} parent=5 // pred_region
        %s117 = ssub.s32 %s9, 1
        // Predicated region
        $region13: #{summary_boosting_indices.1} parent=11 // pred_check
          %p118 = pneg %p56
        $region14: #{summary_boosting_indices.1} parent=11 // pred_check_branch
          %120 = sbr.rel (%p118) target = $region16
        $region15: #{summary_boosting_indices.1} parent=11 // pred_region
          _
        $region16: #{summary_boosting_indices.1} parent=11 // pred_fallthru
          _
        // Predicated region
        $region17: #{summary_boosting_indices.1} parent=11 // pred_check
          %p121 = pneg %p77
        $region18: #{summary_boosting_indices.1} parent=11 // pred_check_branch
          %123 = sbr.rel (%p121) target = $region20
        $region19: #{summary_boosting_indices.1} parent=11 // pred_region
          _
        $region20: #{summary_boosting_indices.1} parent=11 // pred_fallthru
          _
      $region12: #{summary_boosting_indices.1} parent=5 // pred_fallthru
        _
      %p124 = scmp.lt.s32.totalorder %s9, 3
      // Predicated region
      $region21: #{summary_boosting_indices.1} parent=5 // pred_check
        %p125 = pneg %p124
      $region22: #{summary_boosting_indices.1} parent=5 // pred_check_branch
        %127 = sbr.rel (%p125) target = $region24
      $region23: #{summary_boosting_indices.1} parent=5 // pred_region
        // Predicated region
        $region25: #{summary_boosting_indices.1} parent=23 // pred_check
          %p128 = pneg %p29
        $region26: #{summary_boosting_indices.1} parent=23 // pred_check_branch
          %130 = sbr.rel (%p128) target = $region28
        $region27: #{summary_boosting_indices.1} parent=23 // pred_region
          %s131 = sand.u32 %s19, 1
          %s132 = sand.u32 %s19, 1
          %s133 = smul.addr %s132, 16
          %s134 = scalar_lea.vmem [#allocation3], %s133
          %s135 = smul.addr %s9, 4
          %s136 = scalar_lea.vmem %s0, %s135
          // Predicated region
          $region29: #{summary_boosting_indices.1} parent=27 // pred_check
            _
          $region30: #{summary_boosting_indices.1} parent=27 // pred_check_branch
            %138 = sbr.rel (0) target = $region32
          $region31: #{summary_boosting_indices.1} parent=27 // pred_region
            // Predicated region
            $region33: #{summary_boosting_indices.1} parent=31 // pred_check
              _
            $region34: #{summary_boosting_indices.1} parent=31 // pred_check_branch
              %140 = sbr.rel target = $region36
            $region35: #{summary_boosting_indices.1} parent=31 // pred_region
              // Predicated region
              $region48: #{summary_boosting_indices.1} parent=35 // pred_check
                _
              $region49: #{summary_boosting_indices.1} parent=35 // pred_check_branch
                %161 = sbr.rel (0) target = $region51
              $region50: #{summary_boosting_indices.1} parent=35 // pred_region
                loop: start=0, step=1, limit=1
                $region52: #{summary_boosting_indices.1} parent=50 // loop_pre_header
                  _
                $region53: #{summary_boosting_indices.1} parent=50 // loop_header
                  %s163 = sphi 0, %s167
                  %p164 = scmp.ge.s32.totalorder %s163, 1
                  %s168 = sphi %s136, %s136
                  %s169 = sphi %s134, %s134
                $region54: #{summary_boosting_indices.1} parent=50 // loop_header_branch
                  %166 = sbr.rel (%p164) target = $region58
                $region55: #{summary_boosting_indices.1} parent=50 // loop_body
                  _
                $region56: #{summary_boosting_indices.1} parent=50 // loop_footer
                  %s167 = sadd.s32 1, %s163
                $region57: #{summary_boosting_indices.1} parent=50 // loop_footer_branch
                  %162 = sbr.rel target = $region53
                $region58: #{summary_boosting_indices.1} parent=50 // loop_exit
                  _
                loop: start=0, step=1, limit=1
                $region59: #{summary_boosting_indices.1} parent=50 // loop_pre_header
                  _
                $region60: #{summary_boosting_indices.1} parent=50 // loop_header
                  %s172 = sphi 0, %s176
                  %p173 = scmp.ge.s32.totalorder %s172, 1
                  %s177 = sphi %s136, %s136
                  %s178 = sphi %s134, %s134
                $region61: #{summary_boosting_indices.1} parent=50 // loop_header_branch
                  %175 = sbr.rel (%p173) target = $region65
                $region62: #{summary_boosting_indices.1} parent=50 // loop_body
                  %v179 = vld [vmem:[%s177] sm:$0xf]
                  %180 = vst [vmem:[%s178] sm:$0xf] %v179
                  %v181 = vld [vmem:[%s177 + $0xc] sm:$0xf]
                  %182 = vst [vmem:[%s178 + $0x4] sm:$0xf] %v181
                  %v183 = vld [vmem:[%s177 + $0x18] sm:$0xf]
                  %184 = vst [vmem:[%s178 + $0x8] sm:$0xf] %v183
                  %v185 = vld [vmem:[%s177 + $0x24] sm:$0xf]
                  %186 = vst [vmem:[%s178 + $0xc] sm:$0xf] %v185
                $region63: #{summary_boosting_indices.1} parent=50 // loop_footer
                  %s176 = sadd.s32 1, %s172
                $region64: #{summary_boosting_indices.1} parent=50 // loop_footer_branch
                  %171 = sbr.rel target = $region60
                $region65: #{summary_boosting_indices.1} parent=50 // loop_exit
                  _
              $region51: #{summary_boosting_indices.1} parent=35 // pred_fallthru
                _
            $region36: #{summary_boosting_indices.1} parent=31 // pred_fallthru
              _
            // Predicated region
            $region37: #{summary_boosting_indices.1} parent=31 // pred_check
              _
            $region38: #{summary_boosting_indices.1} parent=31 // pred_check_branch
              %142 = sbr.rel (0) target = $region40
            $region39: #{summary_boosting_indices.1} parent=31 // pred_region
              loop: start=0, step=1, limit=1
              $region41: #{summary_boosting_indices.1} parent=39 // loop_pre_header
                _
              $region42: #{summary_boosting_indices.1} parent=39 // loop_header
                %s145 = sphi 0, %s149
                %p146 = scmp.ge.s32.totalorder %s145, 1
                %s150 = sphi %s136, %s136
                %s151 = sphi %s134, %s134
              $region43: #{summary_boosting_indices.1} parent=39 // loop_header_branch
                %148 = sbr.rel (%p146) target = $region47
              $region44: #{summary_boosting_indices.1} parent=39 // loop_body
                %v152 = vld [vmem:[%s150] sm:$0xf]
                %153 = vst [vmem:[%s151] sm:$0xf] %v152
                %v154 = vld [vmem:[%s150 + $0xc] sm:$0xf]
                %155 = vst [vmem:[%s151 + $0x4] sm:$0xf] %v154
                %v156 = vld [vmem:[%s150 + $0x18] sm:$0xf]
                %157 = vst [vmem:[%s151 + $0x8] sm:$0xf] %v156
                %v158 = vld [vmem:[%s150 + $0x24] sm:$0xf]
                %159 = vst [vmem:[%s151 + $0xc] sm:$0xf] %v158
              $region45: #{summary_boosting_indices.1} parent=39 // loop_footer
                %s149 = sadd.s32 1, %s145
              $region46: #{summary_boosting_indices.1} parent=39 // loop_footer_branch
                %144 = sbr.rel target = $region42
              $region47: #{summary_boosting_indices.1} parent=39 // loop_exit
                _
            $region40: #{summary_boosting_indices.1} parent=31 // pred_fallthru
              _
          $region32: #{summary_boosting_indices.1} parent=27 // pred_fallthru
            _
          %187 = vnop
        $region28: #{summary_boosting_indices.1} parent=23 // pred_fallthru
          _
      $region24: #{summary_boosting_indices.1} parent=5 // pred_fallthru
        _
      %p188 = scmp.le.s32.totalorder 1, %s9
      %p189 = scmp.lt.s32.totalorder %s9, 4
      %p190 = pnand %p188, %p189
      %p191 = pneg %p190
      // Predicated region
      $region66: #{summary_boosting_indices.1} parent=5 // pred_check
        _
      $region67: #{summary_boosting_indices.1} parent=5 // pred_check_branch
        %193 = sbr.rel (%p190) target = $region69
      $region68: #{summary_boosting_indices.1} parent=5 // pred_region
        %s194 = ssub.s32 %s9, 1
        %s195 = sand.u32 %s22, 1
        %s196 = sand.u32 %s22, 1
        %s197 = smul.addr %s196, 16
        %s198 = scalar_lea.vmem [#allocation3], %s197
        // Predicated region
        $region70: #{summary_boosting_indices.1} parent=68 // pred_check
          %p199 = pneg %p35
        $region71: #{summary_boosting_indices.1} parent=68 // pred_check_branch
          %201 = sbr.rel (%p199) target = $region73
        $region72: #{summary_boosting_indices.1} parent=68 // pred_region
          _
        $region73: #{summary_boosting_indices.1} parent=68 // pred_fallthru
          _
        %s202 = sand.u32 %s22, 1
        %s203 = sand.u32 %s22, 1
        %s204 = smul.addr %s203, 16
        %s205 = scalar_lea.vmem [#allocation3], %s204
        %p206 = pneg %p35
        %p207 = pneg %p32
        %p208 = pneg %p56
        %p209 = pneg %p53
        %p210 = pneg %p77
        %p211 = pneg %p74
        %p212 = pneg %p103
        %p213 = pneg %p100
        %p214 = scmp.lt.s32.totalorder %s14, 2
        %s215 = scalar_select %p214, %s14, 2
        %s216 = scalar_lea.vmem %s3, %s215
        %p217 = scmp.lt.s32.totalorder %s14, 2
        %s218 = scalar_select %p217, %s14, 2
        %s219 = scalar_lea.vmem %s3, %s218
        %v221 = vld [vmem:[%s198] sm:$0xf]
        %v222 = vld [vmem:[%s198 + $0x4] sm:$0xf]
        %v223 = vld [vmem:[%s198 + $0x8] sm:$0xf]
        %v224 = vld [vmem:[%s198 + $0xc] sm:$0xf]
        %v225 = vld [vmem:[%s1] sm:$0xf]
        %v226 = vld [vmem:[%s1 + $0x4] sm:$0xf]
        %v227 = vld [vmem:[%s1 + $0x8] sm:$0xf]
        %v228 = vld [vmem:[%s1 + $0xc] sm:$0xf]
        %v233 = vunpack.c.l.b16 %v225
        %v234 = vunpack.c.l.b16 %v226
        %v235 = vunpack.c.l.b16 %v227
        %v236 = vunpack.c.l.b16 %v228
        %v237 = vpack.c.b16 %v234, %v233
        %v238 = vpack.c.b16 %v236, %v235
        %v243 = vunpack.c.l.b16 %v221
        %v244 = vunpack.c.l.b16 %v222
        %v245 = vunpack.c.l.b16 %v223
        %v246 = vunpack.c.l.b16 %v224
        %v247 = vpack.c.b16 %v244, %v243
        %v248 = vpack.c.b16 %v246, %v245
        %vm251 = vcmask 261120
        %v253 = vsel %vm251, %v237, 0
        %v256 = vsel %vm251, %v238, 0
        %258 = vmatprep.subr.bf16.mxu0 0
        %259 = vmatpush1.bf16.msra.mxu0 %v247
        %260 = vmatprep.subr.bf16.mxu0 0
        %261 = vmatpush1.bf16.msra.mxu0 %v248
        %262 = vmatprep.subr.bf16.mxu0 0
        %263 = vmatpush1.bf16.msra.mxu0 0
        %264 = vmatprep.subr.bf16.mxu0 0
        %265 = vmatpush1.bf16.msra.mxu0 0
        %266 = vmatprep.subr.bf16.mxu0 0
        %267 = vmatpush1.bf16.msra.mxu0 0
        %268 = vmatprep.subr.bf16.mxu0 0
        %269 = vmatpush1.bf16.msra.mxu0 0
        %270 = vmatprep.subr.bf16.mxu0 0
        %271 = vmatpush1.bf16.msra.mxu0 0
        %272 = vmatprep.subr.bf16.mxu0 0
        %273 = vmatpush1.bf16.msra.mxu0 0
        %274 = vmatprep.subr.bf16.mxu0 0
        %275 = vmatpush1.bf16.msra.mxu0 0
        %276 = vmatprep.subr.bf16.mxu0 0
        %277 = vmatpush1.bf16.msra.mxu0 0
        %278 = vmatprep.subr.bf16.mxu0 0
        %279 = vmatpush1.bf16.msra.mxu0 0
        %280 = vmatprep.subr.bf16.mxu0 0
        %281 = vmatpush1.bf16.msra.mxu0 0
        %282 = vmatprep.subr.bf16.mxu0 0
        %283 = vmatpush1.bf16.msra.mxu0 0
        %284 = vmatprep.subr.bf16.mxu0 0
        %285 = vmatpush1.bf16.msra.mxu0 0
        %286 = vmatprep.subr.bf16.mxu0 0
        %287 = vmatpush1.bf16.msra.mxu0 0
        %288 = vmatprep.subr.bf16.mxu0 0
        %289 = vmatpush1.bf16.msra.mxu0 0
        %290 = vmatprep.mubr.bf16.mxu0 0
        %291 = vmatmul.mubr.bf16.gmra.mrb[0].mxu0 %v253
        %v292 = vpop.f32.mrb[0].mxu0
        %v293 = vadd.f32 0.0, %v292
        %v294 = vpop.f32.mrb[0].mxu0
        %v295 = vpop.f32.mrb[0].mxu0
        %v296 = vadd.f32 0.0, %v295
        %v297 = vpop.f32.mrb[0].mxu0
        %298 = vmatprep.mubr.bf16.mxu0 0
        %299 = vmatmul.mubr.bf16.gmra.mrb[0].mxu0 %v256
        %v300 = vpop.f32.mrb[0].mxu0
        %v301 = vadd.f32 0.0, %v300
        %v302 = vpop.f32.mrb[0].mxu0
        %v303 = vpop.f32.mrb[0].mxu0
        %v304 = vadd.f32 0.0, %v303
        %v305 = vpop.f32.mrb[0].mxu0
        %306 = vdwg.mxu0
        %v307 = vlaneseq
        %v308 = vshrl.u32 %v307, 7
        %vm309 = vcmp.ge.s32.totalorder %v308, 4
        %v310 = vsel %vm309, -inf, 0.0
        %v311 = vadd.f32 %v293, %v310
        %v312 = vrot.slane %v311, 4
        %v313 = vmax.f32 %v311, %v312
        %v314 = vrot.slane %v313, 2
        %v315 = vmax.f32 %v313, %v314
        %v316 = vrot.slane %v315, 1
        %v317 = vmax.f32 %v315, %v316
        %vm318 = vcmp.eq.f32.partialorder %v311, %v317
        %v319 = vsel %vm318, %v308, 8
        %v320 = vrot.slane %v319, 4
        %vm321 = vcmp.lt.s32.totalorder %v319, %v320
        %v322 = vsel %vm321, %v319, %v320
        %v323 = vrot.slane %v322, 2
        %vm324 = vcmp.lt.s32.totalorder %v322, %v323
        %v325 = vsel %vm324, %v322, %v323
        %v326 = vrot.slane %v325, 1
        %vm327 = vcmp.lt.s32.totalorder %v325, %v326
        %v328 = vsel %vm327, %v325, %v326
        %vm329 = vcmp.eq.s32.totalorder %v308, %v328
        %v330 = vsel %vm329, 1, 0
        %v331 = vcvt.s32.f32 %v330
        %332 = vst [vmem:[#allocation2] sm:$0xff] %v331
        %v333 = vadd.f32 %v296, %v310
        %v334 = vrot.slane %v333, 4
        %v335 = vmax.f32 %v333, %v334
        %v336 = vrot.slane %v335, 2
        %v337 = vmax.f32 %v335, %v336
        %v338 = vrot.slane %v337, 1
        %v339 = vmax.f32 %v337, %v338
        %vm340 = vcmp.eq.f32.partialorder %v333, %v339
        %v341 = vsel %vm340, %v308, 8
        %v342 = vrot.slane %v341, 4
        %vm343 = vcmp.lt.s32.totalorder %v341, %v342
        %v344 = vsel %vm343, %v341, %v342
        %v345 = vrot.slane %v344, 2
        %vm346 = vcmp.lt.s32.totalorder %v344, %v345
        %v347 = vsel %vm346, %v344, %v345
        %v348 = vrot.slane %v347, 1
        %vm349 = vcmp.lt.s32.totalorder %v347, %v348
        %v350 = vsel %vm349, %v347, %v348
        %vm351 = vcmp.eq.s32.totalorder %v308, %v350
        %v352 = vsel %vm351, 1, 0
        %v353 = vcvt.s32.f32 %v352
        %354 = vst [vmem:[#allocation2 + $0x8] sm:$0xff] %v353
        %v355 = vadd.f32 %v301, %v310
        %v356 = vrot.slane %v355, 4
        %v357 = vmax.f32 %v355, %v356
        %v358 = vrot.slane %v357, 2
        %v359 = vmax.f32 %v357, %v358
        %v360 = vrot.slane %v359, 1
        %v361 = vmax.f32 %v359, %v360
        %vm362 = vcmp.eq.f32.partialorder %v355, %v361
        %v363 = vsel %vm362, %v308, 8
        %v364 = vrot.slane %v363, 4
        %vm365 = vcmp.lt.s32.totalorder %v363, %v364
        %v366 = vsel %vm365, %v363, %v364
        %v367 = vrot.slane %v366, 2
        %vm368 = vcmp.lt.s32.totalorder %v366, %v367
        %v369 = vsel %vm368, %v366, %v367
        %v370 = vrot.slane %v369, 1
        %vm371 = vcmp.lt.s32.totalorder %v369, %v370
        %v372 = vsel %vm371, %v369, %v370
        %vm373 = vcmp.eq.s32.totalorder %v308, %v372
        %v374 = vsel %vm373, 1, 0
        %v375 = vcvt.s32.f32 %v374
        %376 = vst [vmem:[#allocation2 + $0x10] sm:$0xff] %v375
        %v377 = vadd.f32 %v304, %v310
        %v378 = vrot.slane %v377, 4
        %v379 = vmax.f32 %v377, %v378
        %v380 = vrot.slane %v379, 2
        %v381 = vmax.f32 %v379, %v380
        %v382 = vrot.slane %v381, 1
        %v383 = vmax.f32 %v381, %v382
        %vm384 = vcmp.eq.f32.partialorder %v377, %v383
        %v385 = vsel %vm384, %v308, 8
        %v386 = vrot.slane %v385, 4
        %vm387 = vcmp.lt.s32.totalorder %v385, %v386
        %v388 = vsel %vm387, %v385, %v386
        %v389 = vrot.slane %v388, 2
        %vm390 = vcmp.lt.s32.totalorder %v388, %v389
        %v391 = vsel %vm390, %v388, %v389
        %v392 = vrot.slane %v391, 1
        %vm393 = vcmp.lt.s32.totalorder %v391, %v392
        %v394 = vsel %vm393, %v391, %v392
        %vm395 = vcmp.eq.s32.totalorder %v308, %v394
        %v396 = vsel %vm395, 1, 0
        %v397 = vcvt.s32.f32 %v396
        %398 = vst [vmem:[#allocation2 + $0x18] sm:$0xff] %v397
        %v399 = vld [vmem:[%s2] sm:$0xff]
        %v400 = vld [vmem:[#allocation2] sm:$0xff]
        %v401 = vld [vmem:[#allocation2 + $0x8] sm:$0xff]
        %v402 = vld [vmem:[#allocation2 + $0x10] sm:$0xff]
        %v403 = vld [vmem:[#allocation2 + $0x18] sm:$0xff]
        %v405 = vsel %vm251, %v399, 0
        %407 = vmatprep.subr.mxu0 0.0
        %408 = vmatpush1.msra.mxu0 %v400
        %409 = vmatprep.subr.mxu0 0.0
        %410 = vmatpush1.msra.mxu0 %v401
        %411 = vmatprep.subr.mxu0 0.0
        %412 = vmatpush1.msra.mxu0 %v402
        %413 = vmatprep.subr.mxu0 0.0
        %414 = vmatpush1.msra.mxu0 %v403
        %415 = vmatprep.subr.mxu0 0.0
        %416 = vmatpush1.msra.mxu0 0.0
        %417 = vmatprep.subr.mxu0 0.0
        %418 = vmatpush1.msra.mxu0 0.0
        %419 = vmatprep.subr.mxu0 0.0
        %420 = vmatpush1.msra.mxu0 0.0
        %421 = vmatprep.subr.mxu0 0.0
        %422 = vmatpush1.msra.mxu0 0.0
        %423 = vmatprep.subr.mxu0 0.0
        %424 = vmatpush1.msra.mxu0 0.0
        %425 = vmatprep.subr.mxu0 0.0
        %426 = vmatpush1.msra.mxu0 0.0
        %427 = vmatprep.subr.mxu0 0.0
        %428 = vmatpush1.msra.mxu0 0.0
        %429 = vmatprep.subr.mxu0 0.0
        %430 = vmatpush1.msra.mxu0 0.0
        %431 = vmatprep.subr.mxu0 0.0
        %432 = vmatpush1.msra.mxu0 0.0
        %433 = vmatprep.subr.mxu0 0.0
        %434 = vmatpush1.msra.mxu0 0.0
        %435 = vmatprep.subr.mxu0 0.0
        %436 = vmatpush1.msra.mxu0 0.0
        %437 = vmatprep.subr.mxu0 0.0
        %438 = vmatpush1.msra.mxu0 0.0
        %439 = vmatprep.subr.mxu0 0.0
        %440 = vmatpush1.msra.mxu0 0.0
        %441 = vmatprep.subr.mxu0 0.0
        %442 = vmatpush1.msra.mxu0 0.0
        %443 = vmatprep.subr.mxu0 0.0
        %444 = vmatpush1.msra.mxu0 0.0
        %445 = vmatprep.subr.mxu0 0.0
        %446 = vmatpush1.msra.mxu0 0.0
        %447 = vmatprep.subr.mxu0 0.0
        %448 = vmatpush1.msra.mxu0 0.0
        %449 = vmatprep.subr.mxu0 0.0
        %450 = vmatpush1.msra.mxu0 0.0
        %451 = vmatprep.subr.mxu0 0.0
        %452 = vmatpush1.msra.mxu0 0.0
        %453 = vmatprep.subr.mxu0 0.0
        %454 = vmatpush1.msra.mxu0 0.0
        %455 = vmatprep.subr.mxu0 0.0
        %456 = vmatpush1.msra.mxu0 0.0
        %457 = vmatprep.subr.mxu0 0.0
        %458 = vmatpush1.msra.mxu0 0.0
        %459 = vmatprep.subr.mxu0 0.0
        %460 = vmatpush1.msra.mxu0 0.0
        %461 = vmatprep.subr.mxu0 0.0
        %462 = vmatpush1.msra.mxu0 0.0
        %463 = vmatprep.subr.mxu0 0.0
        %464 = vmatpush1.msra.mxu0 0.0
        %465 = vmatprep.subr.mxu0 0.0
        %466 = vmatpush1.msra.mxu0 0.0
        %467 = vmatprep.subr.mxu0 0.0
        %468 = vmatpush1.msra.mxu0 0.0
        %469 = vmatprep.subr.mxu0 0.0
        %470 = vmatpush1.msra.mxu0 0.0
        %471 = vmatprep.mubr.f32.mxu0 0.0
        %472 = vmatmul.mubr.f32.gmra.mrb[0].mxu0 %v405
        %v473 = vpop.f32.mrb[0].mxu0
        %v474 = vadd.f32 %v310, %v473
        %v475 = vpop.f32.mrb[0].mxu0
        %476 = vdwg.mxu0
        %v477 = vrot.slane %v474, 4
        %v478 = vmax.f32 %v474, %v477
        %v479 = vrot.slane %v478, 2
        %v480 = vmax.f32 %v478, %v479
        %v481 = vrot.slane %v480, 1
        %v482 = vmax.f32 %v480, %v481
        %vm483 = vcmp.eq.f32.partialorder %v474, %v482
        %v484 = vsel %vm483, %v308, 8
        %v485 = vrot.slane %v484, 4
        %vm486 = vcmp.lt.s32.totalorder %v484, %v485
        %v487 = vsel %vm486, %v484, %v485
        %v488 = vrot.slane %v487, 2
        %vm489 = vcmp.lt.s32.totalorder %v487, %v488
        %v490 = vsel %vm489, %v487, %v488
        %v491 = vrot.slane %v490, 1
        %vm492 = vcmp.lt.s32.totalorder %v490, %v491
        %v493 = vsel %vm492, %v490, %v491
        %494 = vst [vmem:[%s219] sm:$0x1] %v493
        %p495 = scmp.lt.s32.totalorder %s14, 2
        %s496 = scalar_select %p495, %s14, 2
        %s497 = scalar_lea.vmem %s3, %s496
        // Predicated region
        $region74: #{summary_boosting_indices.1} parent=68 // pred_check
          %p498 = pneg %p100
        $region75: #{summary_boosting_indices.1} parent=68 // pred_check_branch
          %500 = sbr.rel (%p498) target = $region77
        $region76: #{summary_boosting_indices.1} parent=68 // pred_region
          _
        $region77: #{summary_boosting_indices.1} parent=68 // pred_fallthru
          _
      $region69: #{summary_boosting_indices.1} parent=5 // pred_fallthru
        _
      %p501 = scmp.le.s32.totalorder 2, %s9
      // Predicated region
      $region78: #{summary_boosting_indices.1} parent=5 // pred_check
        %p502 = pneg %p501
      $region79: #{summary_boosting_indices.1} parent=5 // pred_check_branch
        %504 = sbr.rel (%p502) target = $region81
      $region80: #{summary_boosting_indices.1} parent=5 // pred_region
        %s505 = ssub.s32 %s9, 2
        // Predicated region
        $region82: #{summary_boosting_indices.1} parent=80 // pred_check
          %p506 = pneg %p106
        $region83: #{summary_boosting_indices.1} parent=80 // pred_check_branch
          %508 = sbr.rel (%p506) target = $region85
        $region84: #{summary_boosting_indices.1} parent=80 // pred_region
          %p509 = scmp.lt.s32.totalorder %s15, 2
          %s510 = scalar_select %p509, %s15, 2
          %s511 = scalar_lea.vmem %s3, %s510
        $region85: #{summary_boosting_indices.1} parent=80 // pred_fallthru
          _
      $region81: #{summary_boosting_indices.1} parent=5 // pred_fallthru
        _
    $region6: #{summary_boosting_indices.1} parent=1 // loop_footer
      %s13 = sadd.s32 1, %s9
    $region7: #{summary_boosting_indices.1} parent=1 // loop_footer_branch
      %8 = sbr.rel target = $region3
    $region8: #{summary_boosting_indices.1} parent=1 // loop_exit
      _

</llo_original>
